<compile_context>
chip_gen: v5e
topology: v5e:2x2
jax: 0.10.0
libtpu: 0.0.40
codegen_flags: <defaults>
</compile_context>

<pallas_src>
import functools

import jax
import jax.numpy as jnp
import numpy as np
from jax import lax
from jax.experimental import pallas as pl
from jax.experimental.pallas import tpu as pltpu

EPS = 1e-5


def residual_block_kernel(x_ref, gmat_ref, wm1_ref, g1_ref, be1_ref,
                          wm2_ref, g2_ref, be2_ref, o_ref, pad_ref,
                          *, inv_count):
    # x_ref, o_ref : (H, NWC)      lane-dense slab, lane index = n*W*C + w*C + c
    # gmat_ref     : (NWC, NWC)    0/1 "same channel" matrix: folds per-lane sums
    #                              to per-channel sums AND broadcasts them back to
    #                              every lane in a single matmul
    # wm*_ref      : (3, NWC, NWC) bf16 per-dy block-diagonal banded conv weights
    # g*/be*_ref   : (1, NWC)      BN gamma / beta pre-tiled to the lane layout
    # pad_ref      : (H+2, NWC)    f32 scratch; H-padded slab, halo rows stay 0
    H, NWC = x_ref.shape
    gmat = gmat_ref[...]

    # Zero only the two halo rows, once, shared by both convs (interior rows
    # are fully overwritten before each conv and the halo never changes).
    zero_row = jnp.zeros((1, NWC), jnp.float32)
    pad_ref[0:1, :] = zero_row
    pad_ref[H + 1:H + 2, :] = zero_row

    def conv3x3(wm_ref):
        # One aligned load of the padded slab; 3 MXU pushes (one per dy) with
        # bf16 operands and f32 accumulation.  The dx taps + channel mixing +
        # batch block-diagonal all live inside the (NWC, NWC) matrices.
        p = pad_ref[...]
        y = jnp.dot(p[0:H, :].astype(jnp.bfloat16), wm_ref[0],
                    preferred_element_type=jnp.float32)
        y = y + jnp.dot(p[1:H + 1, :].astype(jnp.bfloat16), wm_ref[1],
                        preferred_element_type=jnp.float32)
        y = y + jnp.dot(p[2:H + 2, :].astype(jnp.bfloat16), wm_ref[2],
                        preferred_element_type=jnp.float32)
        return y                                         # (H, NWC) f32

    def bn_scale_shift(y, g_ref, be_ref):
        # Single-pass per-channel statistics in f32.  The gmat matmul both
        # folds the per-lane sums over (n, w) and broadcasts the per-channel
        # result back to all lanes, so everything downstream is per-lane VPU.
        s = jnp.sum(y, axis=0, keepdims=True)            # (1, NWC)
        ss = jnp.sum(y * y, axis=0, keepdims=True)       # (1, NWC)
        s_lane = jnp.dot(s, gmat, preferred_element_type=jnp.float32)
        ss_lane = jnp.dot(ss, gmat, preferred_element_type=jnp.float32)
        mean = s_lane * inv_count
        var = ss_lane * inv_count - mean * mean          # biased (training BN)
        scale = g_ref[...] * lax.rsqrt(var + EPS)
        shift = be_ref[...] - mean * scale
        return scale, shift

    # ---- conv1: load input into the padded interior ----
    pad_ref[1:H + 1, :] = x_ref[...]
    y1 = conv3x3(wm1_ref)
    scale1, shift1 = bn_scale_shift(y1, g1_ref, be1_ref)

    # ---- BN1 + ReLU (fused FMA), write interior for conv2 ----
    pad_ref[1:H + 1, :] = jnp.maximum(y1 * scale1 + shift1, 0.0)

    # ---- conv2, BN2 + residual + ReLU, single lane-dense store ----
    y2 = conv3x3(wm2_ref)
    scale2, shift2 = bn_scale_shift(y2, g2_ref, be2_ref)
    o_ref[...] = jnp.maximum(y2 * scale2 + shift2 + x_ref[...],
                             0.0).astype(o_ref.dtype)


def _banded_conv_weights(w_oihw, W, N):
    """(Cout, Cin, 3, 3) PyTorch conv weight -> (3, N*W*C, N*W*C) bf16 matrices.

    Per dy:  M[(n, w_in, ci), (n', w_out, co)]
               = (n == n') * w[co, ci, dy, w_in - w_out + 1]
    inside the 3-wide W band, zero elsewhere, so an (H, N*W*C) row-slab matmul
    performs the dx taps + channel contraction for the whole batch at once,
    with implicit zero padding at the W boundary.

    NOTE: the band is only 3*C wide (12 of 128 here) — fine at this toy shape;
    at real channel counts switch to per-dx shifts + dense (Cin, Cout) matmuls.
    """
    w_hwio = jnp.transpose(w_oihw, (2, 3, 1, 0)).astype(jnp.float32)  # (3,3,Ci,Co)
    C = w_hwio.shape[2]
    eye_n = jnp.eye(N, dtype=jnp.float32)
    mats = []
    for dy in range(3):
        m = jnp.zeros((W * C, W * C), jnp.float32)
        for dx in range(3):
            # shift[w_in, w_out] = 1  iff  w_in == w_out + dx - 1
            shift = jnp.eye(W, k=1 - dx, dtype=jnp.float32)
            m = m + jnp.kron(shift, w_hwio[dy, dx])
        mats.append(jnp.kron(eye_n, m))                  # block-diag over batch
    return jnp.stack(mats, axis=0).astype(jnp.bfloat16)


def residual_block(x_nchw, params):
    """x_nchw: (N, C, H, W) float32; params use PyTorch layouts (OIHW weights)."""
    N, C, H, W = x_nchw.shape
    NWC = N * W * C
    # NCHW -> (H, N, W, C) -> (H, N*W*C): batch, width and channel share lanes.
    x_slab = jnp.transpose(x_nchw, (2, 0, 3, 1)).reshape(H, NWC)

    wm1 = _banded_conv_weights(params["w1"], W, N)
    wm2 = _banded_conv_weights(params["w2"], W, N)
    # Conv biases b1/b2 intentionally NOT passed: training-mode BatchNorm
    # subtracts the per-channel batch mean right after the conv, so they cancel.

    # 0/1 "same channel" matrix (channel index is the innermost lane index).
    gmat = jnp.tile(jnp.eye(C, dtype=jnp.float32), (N * W, N * W))    # (NWC, NWC)

    def lanes(v):                                        # (C,) -> (1, NWC)
        return jnp.tile(v.reshape(1, C).astype(jnp.float32), (1, N * W))

    g1, be1 = lanes(params["g1"]), lanes(params["beta1"])
    g2, be2 = lanes(params["g2"]), lanes(params["beta2"])

    vmem = pl.BlockSpec(memory_space=pltpu.MemorySpace.VMEM)
    args = (x_slab, gmat, wm1, g1, be1, wm2, g2, be2)
    kernel = functools.partial(residual_block_kernel,
                               inv_count=1.0 / (N * H * W))

    out_slab = pl.pallas_call(
        kernel,
        out_shape=jax.ShapeDtypeStruct((H, NWC), x_nchw.dtype),
        in_specs=[vmem] * len(args),
        out_specs=vmem,
        scratch_shapes=[pltpu.VMEM((H + 2, NWC), jnp.float32)],
        # Footprint ~300 KiB: well under every generation's scoped VMEM default,
        # so no vmem_limit override (review item on right-sizing).
    )(*args)

    out = out_slab.reshape(H, N, W, C)
    return jnp.transpose(out, (1, 3, 0, 2))              # -> (N, C, H, W)


def reference(x, params):
    """Pure-JAX f32 reference of the PyTorch forward (NCHW, with conv biases)."""
    def conv(inp, w, b):
        out = lax.conv_general_dilated(
            inp, w, window_strides=(1, 1), padding="SAME",
            dimension_numbers=("NCHW", "OIHW", "NCHW"))
        return out + b[None, :, None, None]

    def bn(inp, g, be):
        mean = jnp.mean(inp, axis=(0, 2, 3), keepdims=True)
        var = jnp.mean((inp - mean) ** 2, axis=(0, 2, 3), keepdims=True)
        return ((inp - mean) * lax.rsqrt(var + EPS) * g[None, :, None, None]
                + be[None, :, None, None])

    h = jnp.maximum(bn(conv(x, params["w1"], params["b1"]),
                       params["g1"], params["beta1"]), 0.0)
    out = bn(conv(h, params["w2"], params["b2"]),
             params["g2"], params["beta2"])
    return jnp.maximum(out + x, 0.0)


if __name__ == "__main__":
    N, C, H, W = 2, 4, 16, 16
    key = jax.random.PRNGKey(0)
    ks = jax.random.split(key, 9)
    fan_in = C * 3 * 3
    bound = 1.0 / np.sqrt(fan_in)

    # Deterministic synthetic parameters (PyTorch layouts: conv weight OIHW).
    params = dict(
        w1=jax.random.uniform(ks[0], (C, C, 3, 3), jnp.float32, -bound, bound),
        b1=jax.random.uniform(ks[1], (C,), jnp.float32, -bound, bound),
        g1=1.0 + 0.1 * jax.random.normal(ks[2], (C,), jnp.float32),
        beta1=0.1 * jax.random.normal(ks[3], (C,), jnp.float32),
        w2=jax.random.uniform(ks[4], (C, C, 3, 3), jnp.float32, -bound, bound),
        b2=jax.random.uniform(ks[5], (C,), jnp.float32, -bound, bound),
        g2=1.0 + 0.1 * jax.random.normal(ks[6], (C,), jnp.float32),
        beta2=0.1 * jax.random.normal(ks[7], (C,), jnp.float32),
    )
    x = jax.random.normal(ks[8], (N, C, H, W), jnp.float32)

    out = residual_block(x, params)
    jax.block_until_ready(out)

    ref = reference(x, params)
    # Tolerance relaxed vs the f32 version: conv MXU operands are bf16
    # (f32 accumulation / BN stats), per the performance review.
    np.testing.assert_allclose(np.asarray(out), np.asarray(ref),
                               rtol=2e-2, atol=2e-2)
    print("KERNEL_OK")
</pallas_src>

<mosaic_0001>
module attributes {stable_mosaic.version = 11 : i64} {
  func.func @residual_block_kernel(%arg0: memref<16x128xf32, #tpu.memory_space<vmem>>, %arg1: memref<128x128xf32, #tpu.memory_space<vmem>>, %arg2: memref<3x128x128xbf16, #tpu.memory_space<vmem>>, %arg3: memref<1x128xf32, #tpu.memory_space<vmem>>, %arg4: memref<1x128xf32, #tpu.memory_space<vmem>>, %arg5: memref<3x128x128xbf16, #tpu.memory_space<vmem>>, %arg6: memref<1x128xf32, #tpu.memory_space<vmem>>, %arg7: memref<1x128xf32, #tpu.memory_space<vmem>>, %arg8: memref<16x128xf32, #tpu.memory_space<vmem>>, %arg9: memref<18x128xf32, #tpu.memory_space<vmem>>) attributes {dimension_semantics = [], scalar_prefetch = 0 : i64, scratch_operands = 1 : i64, tpu.core_type = #tpu.core_type<tc>} {
    %c0 = arith.constant 0 : index
    %c0_0 = arith.constant 0 : index
    %0 = vector.load %arg1[%c0, %c0_0] : memref<128x128xf32, #tpu.memory_space<vmem>>, vector<128x128xf32>
    %cst = arith.constant 0.000000e+00 : f32
    %1 = vector.broadcast %cst : f32 to vector<1x128xf32>
    %c0_1 = arith.constant 0 : index
    %c0_2 = arith.constant 0 : index
    %2 = vector.load %arg9[%c0_1, %c0_2] : memref<18x128xf32, #tpu.memory_space<vmem>>, vector<1x128xf32>
    tpu.vector_store %arg9[%c0_1, %c0_2], %1 {strides = array<i32>} : memref<18x128xf32, #tpu.memory_space<vmem>>, vector<1x128xf32>,
    %c17 = arith.constant 17 : index
    %c0_3 = arith.constant 0 : index
    %3 = vector.load %arg9[%c17, %c0_3] : memref<18x128xf32, #tpu.memory_space<vmem>>, vector<1x128xf32>
    tpu.vector_store %arg9[%c17, %c0_3], %1 {strides = array<i32>} : memref<18x128xf32, #tpu.memory_space<vmem>>, vector<1x128xf32>,
    %c0_4 = arith.constant 0 : index
    %c0_5 = arith.constant 0 : index
    %4 = vector.load %arg0[%c0_4, %c0_5] : memref<16x128xf32, #tpu.memory_space<vmem>>, vector<16x128xf32>
    %c1 = arith.constant 1 : index
    %c0_6 = arith.constant 0 : index
    %5 = vector.load %arg9[%c1, %c0_6] : memref<18x128xf32, #tpu.memory_space<vmem>>, vector<16x128xf32>
    tpu.vector_store %arg9[%c1, %c0_6], %4 {strides = array<i32>} : memref<18x128xf32, #tpu.memory_space<vmem>>, vector<16x128xf32>,
    %c0_7 = arith.constant 0 : index
    %c0_8 = arith.constant 0 : index
    %6 = vector.load %arg9[%c0_7, %c0_8] : memref<18x128xf32, #tpu.memory_space<vmem>>, vector<18x128xf32>
    %7 = vector.extract_strided_slice %6 {offsets = [0, 0], sizes = [16, 128], strides = [1, 1]} : vector<18x128xf32> to vector<16x128xf32>
    %8 = arith.truncf %7 : vector<16x128xf32> to vector<16x128xbf16>
    %c0_9 = arith.constant 0 : index
    %c0_10 = arith.constant 0 : index
    %c0_11 = arith.constant 0 : index
    %9 = vector.load %arg2[%c0_9, %c0_10, %c0_11] : memref<3x128x128xbf16, #tpu.memory_space<vmem>>, vector<1x128x128xbf16>
    %10 = vector.shape_cast %9 : vector<1x128x128xbf16> to vector<128x128xbf16>
    %cst_12 = arith.constant dense<0.000000e+00> : vector<16x128xf32>
    %11 = tpu.matmul %8, %10, %cst_12 {dimension_numbers = #tpu.dot_dimension_numbers<[1], [0], [0], [1], [0, 0, 1, 1], [], []>} : vector<16x128xbf16>, vector<128x128xbf16>, vector<16x128xf32> -> vector<16x128xf32>
    %12 = vector.extract_strided_slice %6 {offsets = [1, 0], sizes = [16, 128], strides = [1, 1]} : vector<18x128xf32> to vector<16x128xf32>
    %13 = arith.truncf %12 : vector<16x128xf32> to vector<16x128xbf16>
    %c1_13 = arith.constant 1 : index
    %c0_14 = arith.constant 0 : index
    %c0_15 = arith.constant 0 : index
    %14 = vector.load %arg2[%c1_13, %c0_14, %c0_15] : memref<3x128x128xbf16, #tpu.memory_space<vmem>>, vector<1x128x128xbf16>
    %15 = vector.shape_cast %14 : vector<1x128x128xbf16> to vector<128x128xbf16>
    %cst_16 = arith.constant dense<0.000000e+00> : vector<16x128xf32>
    %16 = tpu.matmul %13, %15, %cst_16 {dimension_numbers = #tpu.dot_dimension_numbers<[1], [0], [0], [1], [0, 0, 1, 1], [], []>} : vector<16x128xbf16>, vector<128x128xbf16>, vector<16x128xf32> -> vector<16x128xf32>
    %17 = arith.addf %11, %16 : vector<16x128xf32>
    %18 = vector.extract_strided_slice %6 {offsets = [2, 0], sizes = [16, 128], strides = [1, 1]} : vector<18x128xf32> to vector<16x128xf32>
    %19 = arith.truncf %18 : vector<16x128xf32> to vector<16x128xbf16>
    %c2 = arith.constant 2 : index
    %c0_17 = arith.constant 0 : index
    %c0_18 = arith.constant 0 : index
    %20 = vector.load %arg2[%c2, %c0_17, %c0_18] : memref<3x128x128xbf16, #tpu.memory_space<vmem>>, vector<1x128x128xbf16>
    %21 = vector.shape_cast %20 : vector<1x128x128xbf16> to vector<128x128xbf16>
    %cst_19 = arith.constant dense<0.000000e+00> : vector<16x128xf32>
    %22 = tpu.matmul %19, %21, %cst_19 {dimension_numbers = #tpu.dot_dimension_numbers<[1], [0], [0], [1], [0, 0, 1, 1], [], []>} : vector<16x128xbf16>, vector<128x128xbf16>, vector<16x128xf32> -> vector<16x128xf32>
    %23 = arith.addf %17, %22 : vector<16x128xf32>
    %cst_20 = arith.constant dense<0.000000e+00> : vector<128xf32>
    %24 = vector.multi_reduction <add>, %23, %cst_20 [0] : vector<16x128xf32> to vector<128xf32>
    %25 = vector.shape_cast %24 : vector<128xf32> to vector<1x128xf32>
    %26 = arith.mulf %23, %23 : vector<16x128xf32>
    %cst_21 = arith.constant dense<0.000000e+00> : vector<128xf32>
    %27 = vector.multi_reduction <add>, %26, %cst_21 [0] : vector<16x128xf32> to vector<128xf32>
    %28 = vector.shape_cast %27 : vector<128xf32> to vector<1x128xf32>
    %cst_22 = arith.constant dense<0.000000e+00> : vector<1x128xf32>
    %29 = tpu.matmul %25, %0, %cst_22 {dimension_numbers = #tpu.dot_dimension_numbers<[1], [0], [0], [1], [0, 0, 1, 1], [], []>} : vector<1x128xf32>, vector<128x128xf32>, vector<1x128xf32> -> vector<1x128xf32>
    %cst_23 = arith.constant dense<0.000000e+00> : vector<1x128xf32>
    %30 = tpu.matmul %28, %0, %cst_23 {dimension_numbers = #tpu.dot_dimension_numbers<[1], [0], [0], [1], [0, 0, 1, 1], [], []>} : vector<1x128xf32>, vector<128x128xf32>, vector<1x128xf32> -> vector<1x128xf32>
    %cst_24 = arith.constant 0.001953125 : f32
    %31 = vector.broadcast %cst_24 : f32 to vector<1x128xf32>
    %32 = arith.mulf %29, %31 : vector<1x128xf32>
    %cst_25 = arith.constant 0.001953125 : f32
    %33 = vector.broadcast %cst_25 : f32 to vector<1x128xf32>
    %34 = arith.mulf %30, %33 : vector<1x128xf32>
    %35 = arith.mulf %32, %32 : vector<1x128xf32>
    %36 = arith.subf %34, %35 : vector<1x128xf32>
    %c0_26 = arith.constant 0 : index
    %c0_27 = arith.constant 0 : index
    %37 = vector.load %arg3[%c0_26, %c0_27] : memref<1x128xf32, #tpu.memory_space<vmem>>, vector<1x128xf32>
    %cst_28 = arith.constant 9.99999974E-6 : f32
    %38 = vector.broadcast %cst_28 : f32 to vector<1x128xf32>
    %39 = arith.addf %36, %38 : vector<1x128xf32>
    %40 = math.rsqrt %39 : vector<1x128xf32>
    %41 = arith.mulf %37, %40 : vector<1x128xf32>
    %c0_29 = arith.constant 0 : index
    %c0_30 = arith.constant 0 : index
    %42 = vector.load %arg4[%c0_29, %c0_30] : memref<1x128xf32, #tpu.memory_space<vmem>>, vector<1x128xf32>
    %43 = arith.mulf %32, %41 : vector<1x128xf32>
    %44 = arith.subf %42, %43 : vector<1x128xf32>
    %45 = vector.broadcast %41 : vector<1x128xf32> to vector<16x128xf32>
    %46 = arith.mulf %23, %45 : vector<16x128xf32>
    %47 = vector.broadcast %44 : vector<1x128xf32> to vector<16x128xf32>
    %48 = arith.addf %46, %47 : vector<16x128xf32>
    %cst_31 = arith.constant 0.000000e+00 : f32
    %49 = vector.broadcast %cst_31 : f32 to vector<16x128xf32>
    %50 = arith.maximumf %48, %49 : vector<16x128xf32>
    %c1_32 = arith.constant 1 : index
    %c0_33 = arith.constant 0 : index
    %51 = vector.load %arg9[%c1_32, %c0_33] : memref<18x128xf32, #tpu.memory_space<vmem>>, vector<16x128xf32>
    tpu.vector_store %arg9[%c1_32, %c0_33], %50 {strides = array<i32>} : memref<18x128xf32, #tpu.memory_space<vmem>>, vector<16x128xf32>,
    %c0_34 = arith.constant 0 : index
    %c0_35 = arith.constant 0 : index
    %52 = vector.load %arg9[%c0_34, %c0_35] : memref<18x128xf32, #tpu.memory_space<vmem>>, vector<18x128xf32>
    %53 = vector.extract_strided_slice %52 {offsets = [0, 0], sizes = [16, 128], strides = [1, 1]} : vector<18x128xf32> to vector<16x128xf32>
    %54 = arith.truncf %53 : vector<16x128xf32> to vector<16x128xbf16>
    %c0_36 = arith.constant 0 : index
    %c0_37 = arith.constant 0 : index
    %c0_38 = arith.constant 0 : index
    %55 = vector.load %arg5[%c0_36, %c0_37, %c0_38] : memref<3x128x128xbf16, #tpu.memory_space<vmem>>, vector<1x128x128xbf16>
    %56 = vector.shape_cast %55 : vector<1x128x128xbf16> to vector<128x128xbf16>
    %cst_39 = arith.constant dense<0.000000e+00> : vector<16x128xf32>
    %57 = tpu.matmul %54, %56, %cst_39 {dimension_numbers = #tpu.dot_dimension_numbers<[1], [0], [0], [1], [0, 0, 1, 1], [], []>} : vector<16x128xbf16>, vector<128x128xbf16>, vector<16x128xf32> -> vector<16x128xf32>
    %58 = vector.extract_strided_slice %52 {offsets = [1, 0], sizes = [16, 128], strides = [1, 1]} : vector<18x128xf32> to vector<16x128xf32>
    %59 = arith.truncf %58 : vector<16x128xf32> to vector<16x128xbf16>
    %c1_40 = arith.constant 1 : index
    %c0_41 = arith.constant 0 : index
    %c0_42 = arith.constant 0 : index
    %60 = vector.load %arg5[%c1_40, %c0_41, %c0_42] : memref<3x128x128xbf16, #tpu.memory_space<vmem>>, vector<1x128x128xbf16>
    %61 = vector.shape_cast %60 : vector<1x128x128xbf16> to vector<128x128xbf16>
    %cst_43 = arith.constant dense<0.000000e+00> : vector<16x128xf32>
    %62 = tpu.matmul %59, %61, %cst_43 {dimension_numbers = #tpu.dot_dimension_numbers<[1], [0], [0], [1], [0, 0, 1, 1], [], []>} : vector<16x128xbf16>, vector<128x128xbf16>, vector<16x128xf32> -> vector<16x128xf32>
    %63 = arith.addf %57, %62 : vector<16x128xf32>
    %64 = vector.extract_strided_slice %52 {offsets = [2, 0], sizes = [16, 128], strides = [1, 1]} : vector<18x128xf32> to vector<16x128xf32>
    %65 = arith.truncf %64 : vector<16x128xf32> to vector<16x128xbf16>
    %c2_44 = arith.constant 2 : index
    %c0_45 = arith.constant 0 : index
    %c0_46 = arith.constant 0 : index
    %66 = vector.load %arg5[%c2_44, %c0_45, %c0_46] : memref<3x128x128xbf16, #tpu.memory_space<vmem>>, vector<1x128x128xbf16>
    %67 = vector.shape_cast %66 : vector<1x128x128xbf16> to vector<128x128xbf16>
    %cst_47 = arith.constant dense<0.000000e+00> : vector<16x128xf32>
    %68 = tpu.matmul %65, %67, %cst_47 {dimension_numbers = #tpu.dot_dimension_numbers<[1], [0], [0], [1], [0, 0, 1, 1], [], []>} : vector<16x128xbf16>, vector<128x128xbf16>, vector<16x128xf32> -> vector<16x128xf32>
    %69 = arith.addf %63, %68 : vector<16x128xf32>
    %cst_48 = arith.constant dense<0.000000e+00> : vector<128xf32>
    %70 = vector.multi_reduction <add>, %69, %cst_48 [0] : vector<16x128xf32> to vector<128xf32>
    %71 = vector.shape_cast %70 : vector<128xf32> to vector<1x128xf32>
    %72 = arith.mulf %69, %69 : vector<16x128xf32>
    %cst_49 = arith.constant dense<0.000000e+00> : vector<128xf32>
    %73 = vector.multi_reduction <add>, %72, %cst_49 [0] : vector<16x128xf32> to vector<128xf32>
    %74 = vector.shape_cast %73 : vector<128xf32> to vector<1x128xf32>
    %cst_50 = arith.constant dense<0.000000e+00> : vector<1x128xf32>
    %75 = tpu.matmul %71, %0, %cst_50 {dimension_numbers = #tpu.dot_dimension_numbers<[1], [0], [0], [1], [0, 0, 1, 1], [], []>} : vector<1x128xf32>, vector<128x128xf32>, vector<1x128xf32> -> vector<1x128xf32>
    %cst_51 = arith.constant dense<0.000000e+00> : vector<1x128xf32>
    %76 = tpu.matmul %74, %0, %cst_51 {dimension_numbers = #tpu.dot_dimension_numbers<[1], [0], [0], [1], [0, 0, 1, 1], [], []>} : vector<1x128xf32>, vector<128x128xf32>, vector<1x128xf32> -> vector<1x128xf32>
    %cst_52 = arith.constant 0.001953125 : f32
    %77 = vector.broadcast %cst_52 : f32 to vector<1x128xf32>
    %78 = arith.mulf %75, %77 : vector<1x128xf32>
    %cst_53 = arith.constant 0.001953125 : f32
    %79 = vector.broadcast %cst_53 : f32 to vector<1x128xf32>
    %80 = arith.mulf %76, %79 : vector<1x128xf32>
    %81 = arith.mulf %78, %78 : vector<1x128xf32>
    %82 = arith.subf %80, %81 : vector<1x128xf32>
    %c0_54 = arith.constant 0 : index
    %c0_55 = arith.constant 0 : index
    %83 = vector.load %arg6[%c0_54, %c0_55] : memref<1x128xf32, #tpu.memory_space<vmem>>, vector<1x128xf32>
    %cst_56 = arith.constant 9.99999974E-6 : f32
    %84 = vector.broadcast %cst_56 : f32 to vector<1x128xf32>
    %85 = arith.addf %82, %84 : vector<1x128xf32>
    %86 = math.rsqrt %85 : vector<1x128xf32>
    %87 = arith.mulf %83, %86 : vector<1x128xf32>
    %c0_57 = arith.constant 0 : index
    %c0_58 = arith.constant 0 : index
    %88 = vector.load %arg7[%c0_57, %c0_58] : memref<1x128xf32, #tpu.memory_space<vmem>>, vector<1x128xf32>
    %89 = arith.mulf %78, %87 : vector<1x128xf32>
    %90 = arith.subf %88, %89 : vector<1x128xf32>
    %91 = vector.broadcast %87 : vector<1x128xf32> to vector<16x128xf32>
    %92 = arith.mulf %69, %91 : vector<16x128xf32>
    %93 = vector.broadcast %90 : vector<1x128xf32> to vector<16x128xf32>
    %94 = arith.addf %92, %93 : vector<16x128xf32>
    %c0_59 = arith.constant 0 : index
    %c0_60 = arith.constant 0 : index
    %95 = vector.load %arg0[%c0_59, %c0_60] : memref<16x128xf32, #tpu.memory_space<vmem>>, vector<16x128xf32>
    %96 = arith.addf %94, %95 : vector<16x128xf32>
    %cst_61 = arith.constant 0.000000e+00 : f32
    %97 = vector.broadcast %cst_61 : f32 to vector<16x128xf32>
    %98 = arith.maximumf %96, %97 : vector<16x128xf32>
    %c0_62 = arith.constant 0 : index
    %c0_63 = arith.constant 0 : index
    %99 = vector.load %arg8[%c0_62, %c0_63] : memref<16x128xf32, #tpu.memory_space<vmem>>, vector<16x128xf32>
    tpu.vector_store %arg8[%c0_62, %c0_63], %98 {strides = array<i32>} : memref<16x128xf32, #tpu.memory_space<vmem>>, vector<16x128xf32>,
    return
  }
}

</mosaic_0001>

<llo_original>
// kernel: tpu_custom_call.1
$region0: #{tpu_custom_call.1}
  #allocation0 [shape = 'u32[]', space=smem, size = 0x4, offset = 0x4, fixed_abs, tag = 'smem constant byte address 0x4 - core index']
  #allocation1 [shape = 'u32[72,128]{1,0:T(1,128)}', space=vmem, size = 0x9000, scoped, tag = 'internal scratch']
  #allocation2 [shape = 'f32[18,128]{1,0:T(8,128)}', space=vmem, size = 0x3000, scoped, tag = 'scratch operand']
  %s0 = inlined_call_operand.hbm [shape: f32[16,128], index: 0, kind: input, shape index: {}]
  %s1 = inlined_call_operand.hbm [shape: f32[128,128], index: 1, kind: input, shape index: {}]
  %s2 = inlined_call_operand.hbm [shape: bf16[3,128,128], index: 2, kind: input, shape index: {}]
  %s3 = inlined_call_operand.vmem [shape: f32[1,128], index: 3, kind: input, shape index: {}]
  %s4 = inlined_call_operand.vmem [shape: f32[1,128], index: 4, kind: input, shape index: {}]
  %s5 = inlined_call_operand.hbm [shape: bf16[3,128,128], index: 5, kind: input, shape index: {}]
  %s6 = inlined_call_operand.vmem [shape: f32[1,128], index: 6, kind: input, shape index: {}]
  %s7 = inlined_call_operand.vmem [shape: f32[1,128], index: 7, kind: input, shape index: {}]
  %s8 = inlined_call_operand.hbm [shape: f32[16,128], index: 8, kind: output, shape index: {}]
  %s9 = sld [smem:[#allocation0]]
  $region58: #{tpu_custom_call.1} parent=0
    _
  %s11 = ssub.s32 1, %s9
  %s12 = scalar_select 0, %s11, %s9
  $region1: #{tpu_custom_call.1} parent=0
    #allocation3 [shape = 'u8[8192]{0}', space=vmem, size = 0x2000, scoped, tag = 'input window, operand 0, single buffered']
    #allocation4 [shape = 's32[1]{0}', space=sflag, size = 0x4, scoped, tag = 'scoped memory for tpu_custom_call.1']
    #allocation5 [shape = 's32[1]{0}', space=sflag, size = 0x4, scoped, tag = 'scoped memory for tpu_custom_call.1']
    #allocation6 [shape = 'u8[65536]{0}', space=vmem, size = 0x10000, scoped, tag = 'input window, operand 1, single buffered']
    #allocation7 [shape = 's32[1]{0}', space=sflag, size = 0x4, scoped, tag = 'scoped memory for tpu_custom_call.1']
    #allocation8 [shape = 'u8[98304]{0}', space=vmem, size = 0x18000, scoped, tag = 'input window, operand 2, single buffered']
    #allocation9 [shape = 'u8[98304]{0}', space=vmem, size = 0x18000, scoped, tag = 'input window, operand 5, single buffered']
    #allocation10 [shape = 's32[1]{0}', space=sflag, size = 0x4, scoped, tag = 'scoped memory for tpu_custom_call.1']
    #allocation11 [shape = 'u8[8192]{0}', space=vmem, size = 0x2000, scoped, tag = 'output window, operand 0, single buffered']
    %13 = vsyncpa [#allocation4], 0
    %14 = vsyncpa [#allocation7], 0
    %15 = vsyncpa [#allocation10], 0
    %16 = vsyncpa [#allocation5], 0
    // Predicated region
    $region2: #{tpu_custom_call.1} parent=1 // pred_check
      _
    $region3: #{tpu_custom_call.1} parent=1 // pred_check_branch
      %18 = sbr.rel (0) target = $region5
    $region4: #{tpu_custom_call.1} parent=1 // pred_region
      %20 = vsyncadd [#allocation4], 0
      %s21 = sshll.u32 %s0, 4
      %s22 = int_to_ptr.hbm [resolvable:$true] %s21
      %s23 = sshll.u32 [#allocation3], 4
      %s24 = int_to_ptr.vmem [resolvable:$true] %s23
      %29 = dma.hbm_to_vmem [thread:$0]  %s22, 256, %s24, [#allocation4], 128, 128, 8
    $region5: #{tpu_custom_call.1} parent=1 // pred_fallthru
      _
    // Predicated region
    $region6: #{tpu_custom_call.1} parent=1 // pred_check
      _
    $region7: #{tpu_custom_call.1} parent=1 // pred_check_branch
      %31 = sbr.rel (0) target = $region9
    $region8: #{tpu_custom_call.1} parent=1 // pred_region
      %33 = vsyncadd [#allocation7], 0
      %s34 = sshll.u32 %s1, 4
      %s35 = int_to_ptr.hbm [resolvable:$true] %s34
      %s36 = sshll.u32 [#allocation6], 4
      %s37 = int_to_ptr.vmem [resolvable:$true] %s36
      %42 = dma.hbm_to_vmem [thread:$0]  %s35, 2048, %s37, [#allocation7], 128, 128, 8
    $region9: #{tpu_custom_call.1} parent=1 // pred_fallthru
      _
    // Predicated region
    $region10: #{tpu_custom_call.1} parent=1 // pred_check
      _
    $region11: #{tpu_custom_call.1} parent=1 // pred_check_branch
      %44 = sbr.rel (0) target = $region13
    $region12: #{tpu_custom_call.1} parent=1 // pred_region
      %46 = vsyncadd [#allocation7], 0
      %s47 = sshll.u32 %s2, 4
      %s48 = int_to_ptr.hbm [resolvable:$true] %s47
      %s49 = sshll.u32 [#allocation8], 4
      %s50 = int_to_ptr.vmem [resolvable:$true] %s49
      %55 = dma.hbm_to_vmem [thread:$0]  %s48, 3072, %s50, [#allocation7], 64, 64, 4
    $region13: #{tpu_custom_call.1} parent=1 // pred_fallthru
      _
    // Predicated region
    $region14: #{tpu_custom_call.1} parent=1 // pred_check
      _
    $region15: #{tpu_custom_call.1} parent=1 // pred_check_branch
      %57 = sbr.rel (0) target = $region17
    $region16: #{tpu_custom_call.1} parent=1 // pred_region
      _
    $region17: #{tpu_custom_call.1} parent=1 // pred_fallthru
      _
    // Predicated region
    $region18: #{tpu_custom_call.1} parent=1 // pred_check
      _
    $region19: #{tpu_custom_call.1} parent=1 // pred_check_branch
      %59 = sbr.rel (0) target = $region21
    $region20: #{tpu_custom_call.1} parent=1 // pred_region
      _
    $region21: #{tpu_custom_call.1} parent=1 // pred_fallthru
      _
    // Predicated region
    $region22: #{tpu_custom_call.1} parent=1 // pred_check
      _
    $region23: #{tpu_custom_call.1} parent=1 // pred_check_branch
      %61 = sbr.rel (0) target = $region25
    $region24: #{tpu_custom_call.1} parent=1 // pred_region
      %63 = vsyncadd [#allocation10], 0
      %s64 = sshll.u32 %s5, 4
      %s65 = int_to_ptr.hbm [resolvable:$true] %s64
      %s66 = sshll.u32 [#allocation9], 4
      %s67 = int_to_ptr.vmem [resolvable:$true] %s66
      %72 = dma.hbm_to_vmem [thread:$0]  %s65, 3072, %s67, [#allocation10], 64, 64, 4
    $region25: #{tpu_custom_call.1} parent=1 // pred_fallthru
      _
    // Predicated region
    $region26: #{tpu_custom_call.1} parent=1 // pred_check
      _
    $region27: #{tpu_custom_call.1} parent=1 // pred_check_branch
      %74 = sbr.rel (0) target = $region29
    $region28: #{tpu_custom_call.1} parent=1 // pred_region
      _
    $region29: #{tpu_custom_call.1} parent=1 // pred_fallthru
      _
    // Predicated region
    $region30: #{tpu_custom_call.1} parent=1 // pred_check
      _
    $region31: #{tpu_custom_call.1} parent=1 // pred_check_branch
      %76 = sbr.rel (0) target = $region33
    $region32: #{tpu_custom_call.1} parent=1 // pred_region
      _
    $region33: #{tpu_custom_call.1} parent=1 // pred_fallthru
      _
    // Predicated region
    $region34: #{tpu_custom_call.1} parent=1 // pred_check
      _
    $region35: #{tpu_custom_call.1} parent=1 // pred_check_branch
      %78 = sbr.rel (0) target = $region37
    $region36: #{tpu_custom_call.1} parent=1 // pred_region
      %80 = dma.done [#allocation4], 256
    $region37: #{tpu_custom_call.1} parent=1 // pred_fallthru
      _
    // Predicated region
    $region38: #{tpu_custom_call.1} parent=1 // pred_check
      _
    $region39: #{tpu_custom_call.1} parent=1 // pred_check_branch
      %82 = sbr.rel (0) target = $region41
    $region40: #{tpu_custom_call.1} parent=1 // pred_region
      %84 = dma.done [#allocation7], 2048
    $region41: #{tpu_custom_call.1} parent=1 // pred_fallthru
      _
    // Predicated region
    $region42: #{tpu_custom_call.1} parent=1 // pred_check
      _
    $region43: #{tpu_custom_call.1} parent=1 // pred_check_branch
      %86 = sbr.rel (0) target = $region45
    $region44: #{tpu_custom_call.1} parent=1 // pred_region
      %88 = dma.done [#allocation7], 3072
    $region45: #{tpu_custom_call.1} parent=1 // pred_fallthru
      _
    // Predicated region
    $region46: #{tpu_custom_call.1} parent=1 // pred_check
      _
    $region47: #{tpu_custom_call.1} parent=1 // pred_check_branch
      %90 = sbr.rel (0) target = $region49
    $region48: #{tpu_custom_call.1} parent=1 // pred_region
      %92 = dma.done [#allocation10], 3072
    $region49: #{tpu_custom_call.1} parent=1 // pred_fallthru
      _
    %v93 = vld [vmem:[#allocation6] sm:$0xff]
    %v94 = vld [vmem:[#allocation6 + $0x8] sm:$0xff]
    %v95 = vld [vmem:[#allocation6 + $0x10] sm:$0xff]
    %v96 = vld [vmem:[#allocation6 + $0x18] sm:$0xff]
    %v97 = vld [vmem:[#allocation6 + $0x20] sm:$0xff]
    %v98 = vld [vmem:[#allocation6 + $0x28] sm:$0xff]
    %v99 = vld [vmem:[#allocation6 + $0x30] sm:$0xff]
    %v100 = vld [vmem:[#allocation6 + $0x38] sm:$0xff]
    %v101 = vld [vmem:[#allocation6 + $0x40] sm:$0xff]
    %v102 = vld [vmem:[#allocation6 + $0x48] sm:$0xff]
    %v103 = vld [vmem:[#allocation6 + $0x50] sm:$0xff]
    %v104 = vld [vmem:[#allocation6 + $0x58] sm:$0xff]
    %v105 = vld [vmem:[#allocation6 + $0x60] sm:$0xff]
    %v106 = vld [vmem:[#allocation6 + $0x68] sm:$0xff]
    %v107 = vld [vmem:[#allocation6 + $0x70] sm:$0xff]
    %v108 = vld [vmem:[#allocation6 + $0x78] sm:$0xff]
    %109 = vst [vmem:[#allocation2] sm:$0x1] 0.0
    %110 = vst [vmem:[#allocation2 + $0x11] sm:$0x1] 0.0
    %v111 = vld [vmem:[#allocation3] sm:$0xff]
    %v112 = vld [vmem:[#allocation3 + $0x8] sm:$0xff]
    %113 = vst [vmem:[#allocation2 + $0x1] sm:$0xff] %v111
    %114 = vst [vmem:[#allocation2 + $0x9] sm:$0xff] %v112
    %v115 = vld [vmem:[#allocation2] sm:$0xff]
    %v116 = vld [vmem:[#allocation2 + $0x8] sm:$0xff]
    %v117 = vld [vmem:[#allocation2 + $0x10] sm:$0x3]
    %v118 = vpack.c.bf16 %v116, %v115
    %v119 = vld [vmem:[#allocation8] sm:$0xf]
    %v120 = vld [vmem:[#allocation8 + $0x4] sm:$0xf]
    %v121 = vld [vmem:[#allocation8 + $0x8] sm:$0xf]
    %v122 = vld [vmem:[#allocation8 + $0xc] sm:$0xf]
    %v123 = vld [vmem:[#allocation8 + $0x10] sm:$0xf]
    %v124 = vld [vmem:[#allocation8 + $0x14] sm:$0xf]
    %v125 = vld [vmem:[#allocation8 + $0x18] sm:$0xf]
    %v126 = vld [vmem:[#allocation8 + $0x1c] sm:$0xf]
    %v127 = vld [vmem:[#allocation8 + $0x20] sm:$0xf]
    %v128 = vld [vmem:[#allocation8 + $0x24] sm:$0xf]
    %v129 = vld [vmem:[#allocation8 + $0x28] sm:$0xf]
    %v130 = vld [vmem:[#allocation8 + $0x2c] sm:$0xf]
    %v131 = vld [vmem:[#allocation8 + $0x30] sm:$0xf]
    %v132 = vld [vmem:[#allocation8 + $0x34] sm:$0xf]
    %v133 = vld [vmem:[#allocation8 + $0x38] sm:$0xf]
    %v134 = vld [vmem:[#allocation8 + $0x3c] sm:$0xf]
    %v135 = vpack.c.bf16 %v117, %v117
    %s136 = scalar_lea.vmem [#allocation8], 64
    %v137 = vld [vmem:[%s136] sm:$0xf]
    %v138 = vld [vmem:[%s136 + $0x4] sm:$0xf]
    %v139 = vld [vmem:[%s136 + $0x8] sm:$0xf]
    %v140 = vld [vmem:[%s136 + $0xc] sm:$0xf]
    %v141 = vld [vmem:[%s136 + $0x10] sm:$0xf]
    %v142 = vld [vmem:[%s136 + $0x14] sm:$0xf]
    %v143 = vld [vmem:[%s136 + $0x18] sm:$0xf]
    %v144 = vld [vmem:[%s136 + $0x1c] sm:$0xf]
    %v145 = vld [vmem:[%s136 + $0x20] sm:$0xf]
    %v146 = vld [vmem:[%s136 + $0x24] sm:$0xf]
    %v147 = vld [vmem:[%s136 + $0x28] sm:$0xf]
    %v148 = vld [vmem:[%s136 + $0x2c] sm:$0xf]
    %v149 = vld [vmem:[%s136 + $0x30] sm:$0xf]
    %v150 = vld [vmem:[%s136 + $0x34] sm:$0xf]
    %v151 = vld [vmem:[%s136 + $0x38] sm:$0xf]
    %v152 = vld [vmem:[%s136 + $0x3c] sm:$0xf]
    %vm153 = vsmask.f32 7424
    %v155 = vshrl.u32 %v118, 16
    %v157 = vshll.u32 %v118, 16
    %v159 = vrot.slane %v157, 1
    %v160 = vor.u32 %v155, %v159
    %v162 = vshll.u32 %v135, 16
    %v164 = vrot.slane %v162, 1
    %v165 = vsel %vm153, %v160, %v164
    %v183 = vunpack.c.l.b16 %v137
    %v184 = vunpack.c.l.b16 %v138
    %v185 = vunpack.c.l.b16 %v139
    %v186 = vunpack.c.l.b16 %v140
    %v187 = vunpack.c.l.b16 %v141
    %v188 = vunpack.c.l.b16 %v142
    %v189 = vunpack.c.l.b16 %v143
    %v190 = vunpack.c.l.b16 %v144
    %v191 = vunpack.c.l.b16 %v145
    %v192 = vunpack.c.l.b16 %v146
    %v193 = vunpack.c.l.b16 %v147
    %v194 = vunpack.c.l.b16 %v148
    %v195 = vunpack.c.l.b16 %v149
    %v196 = vunpack.c.l.b16 %v150
    %v197 = vunpack.c.l.b16 %v151
    %v198 = vunpack.c.l.b16 %v152
    %v199 = vpack.c.b16 %v184, %v183
    %v200 = vpack.c.b16 %v186, %v185
    %v201 = vpack.c.b16 %v188, %v187
    %v202 = vpack.c.b16 %v190, %v189
    %v203 = vpack.c.b16 %v192, %v191
    %v204 = vpack.c.b16 %v194, %v193
    %v205 = vpack.c.b16 %v196, %v195
    %v206 = vpack.c.b16 %v198, %v197
    %215 = vmatpush.bf16.msra.mxu0 %v206
    %216 = vmatpush.bf16.msra.mxu0 %v205
    %217 = vmatpush.bf16.msra.mxu0 %v204
    %218 = vmatpush.bf16.msra.mxu0 %v203
    %219 = vmatpush.bf16.msra.mxu0 %v202
    %220 = vmatpush.bf16.msra.mxu0 %v201
    %221 = vmatpush.bf16.msra.mxu0 %v200
    %222 = vmatpush.bf16.msra.mxu0 %v199
    %223 = vmatmul.bf16.gmra.mxu0 %v165
    %v224 = vpop.f32.mrf.mxu0
    %v225 = vadd.f32 0.0, %v224
    %v226 = vpop.f32.mrf.mxu0
    %v227 = vadd.f32 0.0, %v226
    %228 = vdwg.mxu0
    %v245 = vunpack.c.l.b16 %v119
    %v246 = vunpack.c.l.b16 %v120
    %v247 = vunpack.c.l.b16 %v121
    %v248 = vunpack.c.l.b16 %v122
    %v249 = vunpack.c.l.b16 %v123
    %v250 = vunpack.c.l.b16 %v124
    %v251 = vunpack.c.l.b16 %v125
    %v252 = vunpack.c.l.b16 %v126
    %v253 = vunpack.c.l.b16 %v127
    %v254 = vunpack.c.l.b16 %v128
    %v255 = vunpack.c.l.b16 %v129
    %v256 = vunpack.c.l.b16 %v130
    %v257 = vunpack.c.l.b16 %v131
    %v258 = vunpack.c.l.b16 %v132
    %v259 = vunpack.c.l.b16 %v133
    %v260 = vunpack.c.l.b16 %v134
    %v261 = vpack.c.b16 %v246, %v245
    %v262 = vpack.c.b16 %v248, %v247
    %v263 = vpack.c.b16 %v250, %v249
    %v264 = vpack.c.b16 %v252, %v251
    %v265 = vpack.c.b16 %v254, %v253
    %v266 = vpack.c.b16 %v256, %v255
    %v267 = vpack.c.b16 %v258, %v257
    %v268 = vpack.c.b16 %v260, %v259
    %277 = vmatpush.bf16.msra.mxu0 %v268
    %278 = vmatpush.bf16.msra.mxu0 %v267
    %279 = vmatpush.bf16.msra.mxu0 %v266
    %280 = vmatpush.bf16.msra.mxu0 %v265
    %281 = vmatpush.bf16.msra.mxu0 %v264
    %282 = vmatpush.bf16.msra.mxu0 %v263
    %283 = vmatpush.bf16.msra.mxu0 %v262
    %284 = vmatpush.bf16.msra.mxu0 %v261
    %285 = vmatmul.bf16.gmra.mxu0 %v118
    %v286 = vpop.f32.mrf.mxu0
    %v287 = vadd.f32 %v225, %v286
    %v288 = vpop.f32.mrf.mxu0
    %v289 = vadd.f32 %v227, %v288
    %290 = vdwg.mxu0
    %s291 = scalar_lea.vmem [#allocation8], 128
    %v292 = vld [vmem:[%s291] sm:$0xf]
    %v293 = vld [vmem:[%s291 + $0x4] sm:$0xf]
    %v294 = vld [vmem:[%s291 + $0x8] sm:$0xf]
    %v295 = vld [vmem:[%s291 + $0xc] sm:$0xf]
    %v296 = vld [vmem:[%s291 + $0x10] sm:$0xf]
    %v297 = vld [vmem:[%s291 + $0x14] sm:$0xf]
    %v298 = vld [vmem:[%s291 + $0x18] sm:$0xf]
    %v299 = vld [vmem:[%s291 + $0x1c] sm:$0xf]
    %v300 = vld [vmem:[%s291 + $0x20] sm:$0xf]
    %v301 = vld [vmem:[%s291 + $0x24] sm:$0xf]
    %v302 = vld [vmem:[%s291 + $0x28] sm:$0xf]
    %v303 = vld [vmem:[%s291 + $0x2c] sm:$0xf]
    %v304 = vld [vmem:[%s291 + $0x30] sm:$0xf]
    %v305 = vld [vmem:[%s291 + $0x34] sm:$0xf]
    %v306 = vld [vmem:[%s291 + $0x38] sm:$0xf]
    %v307 = vld [vmem:[%s291 + $0x3c] sm:$0xf]
    %vm310 = vcmask 1046528
    %v311 = vrot.slane %v118, 1
    %v312 = vrot.slane %v135, 1
    %v313 = vsel %vm310, %v311, %v312
    %v331 = vunpack.c.l.b16 %v292
    %v332 = vunpack.c.l.b16 %v293
    %v333 = vunpack.c.l.b16 %v294
    %v334 = vunpack.c.l.b16 %v295
    %v335 = vunpack.c.l.b16 %v296
    %v336 = vunpack.c.l.b16 %v297
    %v337 = vunpack.c.l.b16 %v298
    %v338 = vunpack.c.l.b16 %v299
    %v339 = vunpack.c.l.b16 %v300
    %v340 = vunpack.c.l.b16 %v301
    %v341 = vunpack.c.l.b16 %v302
    %v342 = vunpack.c.l.b16 %v303
    %v343 = vunpack.c.l.b16 %v304
    %v344 = vunpack.c.l.b16 %v305
    %v345 = vunpack.c.l.b16 %v306
    %v346 = vunpack.c.l.b16 %v307
    %v347 = vpack.c.b16 %v332, %v331
    %v348 = vpack.c.b16 %v334, %v333
    %v349 = vpack.c.b16 %v336, %v335
    %v350 = vpack.c.b16 %v338, %v337
    %v351 = vpack.c.b16 %v340, %v339
    %v352 = vpack.c.b16 %v342, %v341
    %v353 = vpack.c.b16 %v344, %v343
    %v354 = vpack.c.b16 %v346, %v345
    %363 = vmatpush.bf16.msra.mxu0 %v354
    %364 = vmatpush.bf16.msra.mxu0 %v353
    %365 = vmatpush.bf16.msra.mxu0 %v352
    %366 = vmatpush.bf16.msra.mxu0 %v351
    %367 = vmatpush.bf16.msra.mxu0 %v350
    %368 = vmatpush.bf16.msra.mxu0 %v349
    %369 = vmatpush.bf16.msra.mxu0 %v348
    %370 = vmatpush.bf16.msra.mxu0 %v347
    %371 = vmatmul.bf16.gmra.mxu0 %v313
    %v372 = vpop.f32.mrf.mxu0
    %v373 = vadd.f32 0.0, %v372
    %v374 = vpop.f32.mrf.mxu0
    %v375 = vadd.f32 0.0, %v374
    %376 = vdwg.mxu0
    %v377 = vadd.f32 %v287, %v373
    %v378 = vadd.f32 %v289, %v375
    %v379 = vadd.f32 %v377, %v378
    %v380 = vrot.slane %v379, 4
    %v381 = vadd.f32 %v379, %v380
    %v382 = vrot.slane %v381, 2
    %v383 = vadd.f32 %v381, %v382
    %v384 = vrot.slane %v383, 1
    %v385 = vadd.f32 %v383, %v384
    %v386 = vmul.f32 %v377, %v377
    %v387 = vmul.f32 %v378, %v378
    %v388 = vadd.f32 %v386, %v387
    %v389 = vrot.slane %v388, 4
    %v390 = vadd.f32 %v388, %v389
    %v391 = vrot.slane %v390, 2
    %v392 = vadd.f32 %v390, %v391
    %v393 = vrot.slane %v392, 1
    %v394 = vadd.f32 %v392, %v393
    %395 = vmatpush.msra.mxu0 %v108
    %396 = vmatpush.msra.mxu0 %v107
    %397 = vmatpush.msra.mxu0 %v106
    %398 = vmatpush.msra.mxu0 %v105
    %399 = vmatpush.msra.mxu0 %v104
    %400 = vmatpush.msra.mxu0 %v103
    %401 = vmatpush.msra.mxu0 %v102
    %402 = vmatpush.msra.mxu0 %v101
    %403 = vmatpush.msra.mxu0 %v100
    %404 = vmatpush.msra.mxu0 %v99
    %405 = vmatpush.msra.mxu0 %v98
    %406 = vmatpush.msra.mxu0 %v97
    %407 = vmatpush.msra.mxu0 %v96
    %408 = vmatpush.msra.mxu0 %v95
    %409 = vmatpush.msra.mxu0 %v94
    %410 = vmatpush.msra.mxu0 %v93
    %411 = vmatmul.f32.gmra.mxu0 %v385
    %v412 = vpop.f32.mrf.mxu0
    %v413 = vadd.f32 0.0, %v412
    %414 = vdwg.mxu0
    %415 = vmatpush.msra.mxu0 %v108
    %416 = vmatpush.msra.mxu0 %v107
    %417 = vmatpush.msra.mxu0 %v106
    %418 = vmatpush.msra.mxu0 %v105
    %419 = vmatpush.msra.mxu0 %v104
    %420 = vmatpush.msra.mxu0 %v103
    %421 = vmatpush.msra.mxu0 %v102
    %422 = vmatpush.msra.mxu0 %v101
    %423 = vmatpush.msra.mxu0 %v100
    %424 = vmatpush.msra.mxu0 %v99
    %425 = vmatpush.msra.mxu0 %v98
    %426 = vmatpush.msra.mxu0 %v97
    %427 = vmatpush.msra.mxu0 %v96
    %428 = vmatpush.msra.mxu0 %v95
    %429 = vmatpush.msra.mxu0 %v94
    %430 = vmatpush.msra.mxu0 %v93
    %431 = vmatmul.f32.gmra.mxu0 %v394
    %v432 = vpop.f32.mrf.mxu0
    %v433 = vadd.f32 0.0, %v432
    %434 = vdwg.mxu0
    %v435 = vmul.f32 %v413, 0.001953125
    %v436 = vmul.f32 %v433, 0.001953125
    %v437 = vmul.f32 %v435, %v435
    %v438 = vsub.f32 %v436, %v437
    %v439 = vld [vmem:[%s3] sm:$0x1]
    %v440 = vadd.f32 %v438, 1e-05
    %v441 = vrsqrt.pop %v440
    %v442 = vmul.f32 %v441, %v440
    %v443 = vmul.f32 %v442, %v441
    %v444 = vmul.f32 0.5, %v443
    %v445 = vsub.f32 1.5, %v444
    %v446 = vmul.f32 %v441, %v445
    %vm447 = vweird.f32 %v440
    %vm448 = vweird.f32 %v441
    %vm449 = vmor %vm447, %vm448
    %v450 = vsel %vm449, %v441, %v446
    %v451 = vmul.f32 %v439, %v450
    %v452 = vld [vmem:[%s4] sm:$0x1]
    %v453 = vmul.f32 %v435, %v451
    %v454 = vsub.f32 %v452, %v453
    %v456 = vperm.slane %v451, 0
    %v458 = vmul.f32 %v377, %v456
    %v459 = vmul.f32 %v378, %v456
    %v461 = vperm.slane %v454, 0
    %v463 = vadd.f32 %v458, %v461
    %v464 = vadd.f32 %v459, %v461
    %v465 = vmax.f32 %v463, 0.0
    %v466 = vmax.f32 %v464, 0.0
    %467 = vst [vmem:[#allocation2 + $0x1] sm:$0xff] %v465
    %468 = vst [vmem:[#allocation2 + $0x9] sm:$0xff] %v466
    %v469 = vld [vmem:[#allocation2] sm:$0xff]
    %v470 = vld [vmem:[#allocation2 + $0x8] sm:$0xff]
    %v471 = vld [vmem:[#allocation2 + $0x10] sm:$0x3]
    %v472 = vpack.c.bf16 %v470, %v469
    %v473 = vld [vmem:[#allocation9] sm:$0xf]
    %v474 = vld [vmem:[#allocation9 + $0x4] sm:$0xf]
    %v475 = vld [vmem:[#allocation9 + $0x8] sm:$0xf]
    %v476 = vld [vmem:[#allocation9 + $0xc] sm:$0xf]
    %v477 = vld [vmem:[#allocation9 + $0x10] sm:$0xf]
    %v478 = vld [vmem:[#allocation9 + $0x14] sm:$0xf]
    %v479 = vld [vmem:[#allocation9 + $0x18] sm:$0xf]
    %v480 = vld [vmem:[#allocation9 + $0x1c] sm:$0xf]
    %v481 = vld [vmem:[#allocation9 + $0x20] sm:$0xf]
    %v482 = vld [vmem:[#allocation9 + $0x24] sm:$0xf]
    %v483 = vld [vmem:[#allocation9 + $0x28] sm:$0xf]
    %v484 = vld [vmem:[#allocation9 + $0x2c] sm:$0xf]
    %v485 = vld [vmem:[#allocation9 + $0x30] sm:$0xf]
    %v486 = vld [vmem:[#allocation9 + $0x34] sm:$0xf]
    %v487 = vld [vmem:[#allocation9 + $0x38] sm:$0xf]
    %v488 = vld [vmem:[#allocation9 + $0x3c] sm:$0xf]
    %v489 = vpack.c.bf16 %v471, %v471
    %s490 = scalar_lea.vmem [#allocation9], 64
    %v491 = vld [vmem:[%s490] sm:$0xf]
    %v492 = vld [vmem:[%s490 + $0x4] sm:$0xf]
    %v493 = vld [vmem:[%s490 + $0x8] sm:$0xf]
    %v494 = vld [vmem:[%s490 + $0xc] sm:$0xf]
    %v495 = vld [vmem:[%s490 + $0x10] sm:$0xf]
    %v496 = vld [vmem:[%s490 + $0x14] sm:$0xf]
    %v497 = vld [vmem:[%s490 + $0x18] sm:$0xf]
    %v498 = vld [vmem:[%s490 + $0x1c] sm:$0xf]
    %v499 = vld [vmem:[%s490 + $0x20] sm:$0xf]
    %v500 = vld [vmem:[%s490 + $0x24] sm:$0xf]
    %v501 = vld [vmem:[%s490 + $0x28] sm:$0xf]
    %v502 = vld [vmem:[%s490 + $0x2c] sm:$0xf]
    %v503 = vld [vmem:[%s490 + $0x30] sm:$0xf]
    %v504 = vld [vmem:[%s490 + $0x34] sm:$0xf]
    %v505 = vld [vmem:[%s490 + $0x38] sm:$0xf]
    %v506 = vld [vmem:[%s490 + $0x3c] sm:$0xf]
    %v508 = vshrl.u32 %v472, 16
    %v510 = vshll.u32 %v472, 16
    %v512 = vrot.slane %v510, 1
    %v513 = vor.u32 %v508, %v512
    %v515 = vshll.u32 %v489, 16
    %v517 = vrot.slane %v515, 1
    %v518 = vsel %vm153, %v513, %v517
    %v536 = vunpack.c.l.b16 %v491
    %v537 = vunpack.c.l.b16 %v492
    %v538 = vunpack.c.l.b16 %v493
    %v539 = vunpack.c.l.b16 %v494
    %v540 = vunpack.c.l.b16 %v495
    %v541 = vunpack.c.l.b16 %v496
    %v542 = vunpack.c.l.b16 %v497
    %v543 = vunpack.c.l.b16 %v498
    %v544 = vunpack.c.l.b16 %v499
    %v545 = vunpack.c.l.b16 %v500
    %v546 = vunpack.c.l.b16 %v501
    %v547 = vunpack.c.l.b16 %v502
    %v548 = vunpack.c.l.b16 %v503
    %v549 = vunpack.c.l.b16 %v504
    %v550 = vunpack.c.l.b16 %v505
    %v551 = vunpack.c.l.b16 %v506
    %v552 = vpack.c.b16 %v537, %v536
    %v553 = vpack.c.b16 %v539, %v538
    %v554 = vpack.c.b16 %v541, %v540
    %v555 = vpack.c.b16 %v543, %v542
    %v556 = vpack.c.b16 %v545, %v544
    %v557 = vpack.c.b16 %v547, %v546
    %v558 = vpack.c.b16 %v549, %v548
    %v559 = vpack.c.b16 %v551, %v550
    %568 = vmatpush.bf16.msra.mxu0 %v559
    %569 = vmatpush.bf16.msra.mxu0 %v558
    %570 = vmatpush.bf16.msra.mxu0 %v557
    %571 = vmatpush.bf16.msra.mxu0 %v556
    %572 = vmatpush.bf16.msra.mxu0 %v555
    %573 = vmatpush.bf16.msra.mxu0 %v554
    %574 = vmatpush.bf16.msra.mxu0 %v553
    %575 = vmatpush.bf16.msra.mxu0 %v552
    %576 = vmatmul.bf16.gmra.mxu0 %v518
    %v577 = vpop.f32.mrf.mxu0
    %v578 = vadd.f32 0.0, %v577
    %v579 = vpop.f32.mrf.mxu0
    %v580 = vadd.f32 0.0, %v579
    %581 = vdwg.mxu0
    %v598 = vunpack.c.l.b16 %v473
    %v599 = vunpack.c.l.b16 %v474
    %v600 = vunpack.c.l.b16 %v475
    %v601 = vunpack.c.l.b16 %v476
    %v602 = vunpack.c.l.b16 %v477
    %v603 = vunpack.c.l.b16 %v478
    %v604 = vunpack.c.l.b16 %v479
    %v605 = vunpack.c.l.b16 %v480
    %v606 = vunpack.c.l.b16 %v481
    %v607 = vunpack.c.l.b16 %v482
    %v608 = vunpack.c.l.b16 %v483
    %v609 = vunpack.c.l.b16 %v484
    %v610 = vunpack.c.l.b16 %v485
    %v611 = vunpack.c.l.b16 %v486
    %v612 = vunpack.c.l.b16 %v487
    %v613 = vunpack.c.l.b16 %v488
    %v614 = vpack.c.b16 %v599, %v598
    %v615 = vpack.c.b16 %v601, %v600
    %v616 = vpack.c.b16 %v603, %v602
    %v617 = vpack.c.b16 %v605, %v604
    %v618 = vpack.c.b16 %v607, %v606
    %v619 = vpack.c.b16 %v609, %v608
    %v620 = vpack.c.b16 %v611, %v610
    %v621 = vpack.c.b16 %v613, %v612
    %630 = vmatpush.bf16.msra.mxu0 %v621
    %631 = vmatpush.bf16.msra.mxu0 %v620
    %632 = vmatpush.bf16.msra.mxu0 %v619
    %633 = vmatpush.bf16.msra.mxu0 %v618
    %634 = vmatpush.bf16.msra.mxu0 %v617
    %635 = vmatpush.bf16.msra.mxu0 %v616
    %636 = vmatpush.bf16.msra.mxu0 %v615
    %637 = vmatpush.bf16.msra.mxu0 %v614
    %638 = vmatmul.bf16.gmra.mxu0 %v472
    %v639 = vpop.f32.mrf.mxu0
    %v640 = vadd.f32 %v578, %v639
    %v641 = vpop.f32.mrf.mxu0
    %v642 = vadd.f32 %v580, %v641
    %643 = vdwg.mxu0
    %s644 = scalar_lea.vmem [#allocation9], 128
    %v645 = vld [vmem:[%s644] sm:$0xf]
    %v646 = vld [vmem:[%s644 + $0x4] sm:$0xf]
    %v647 = vld [vmem:[%s644 + $0x8] sm:$0xf]
    %v648 = vld [vmem:[%s644 + $0xc] sm:$0xf]
    %v649 = vld [vmem:[%s644 + $0x10] sm:$0xf]
    %v650 = vld [vmem:[%s644 + $0x14] sm:$0xf]
    %v651 = vld [vmem:[%s644 + $0x18] sm:$0xf]
    %v652 = vld [vmem:[%s644 + $0x1c] sm:$0xf]
    %v653 = vld [vmem:[%s644 + $0x20] sm:$0xf]
    %v654 = vld [vmem:[%s644 + $0x24] sm:$0xf]
    %v655 = vld [vmem:[%s644 + $0x28] sm:$0xf]
    %v656 = vld [vmem:[%s644 + $0x2c] sm:$0xf]
    %v657 = vld [vmem:[%s644 + $0x30] sm:$0xf]
    %v658 = vld [vmem:[%s644 + $0x34] sm:$0xf]
    %v659 = vld [vmem:[%s644 + $0x38] sm:$0xf]
    %v660 = vld [vmem:[%s644 + $0x3c] sm:$0xf]
    %v663 = vrot.slane %v472, 1
    %v664 = vrot.slane %v489, 1
    %v665 = vsel %vm310, %v663, %v664
    %v683 = vunpack.c.l.b16 %v645
    %v684 = vunpack.c.l.b16 %v646
    %v685 = vunpack.c.l.b16 %v647
    %v686 = vunpack.c.l.b16 %v648
    %v687 = vunpack.c.l.b16 %v649
    %v688 = vunpack.c.l.b16 %v650
    %v689 = vunpack.c.l.b16 %v651
    %v690 = vunpack.c.l.b16 %v652
    %v691 = vunpack.c.l.b16 %v653
    %v692 = vunpack.c.l.b16 %v654
    %v693 = vunpack.c.l.b16 %v655
    %v694 = vunpack.c.l.b16 %v656
    %v695 = vunpack.c.l.b16 %v657
    %v696 = vunpack.c.l.b16 %v658
    %v697 = vunpack.c.l.b16 %v659
    %v698 = vunpack.c.l.b16 %v660
    %v699 = vpack.c.b16 %v684, %v683
    %v700 = vpack.c.b16 %v686, %v685
    %v701 = vpack.c.b16 %v688, %v687
    %v702 = vpack.c.b16 %v690, %v689
    %v703 = vpack.c.b16 %v692, %v691
    %v704 = vpack.c.b16 %v694, %v693
    %v705 = vpack.c.b16 %v696, %v695
    %v706 = vpack.c.b16 %v698, %v697
    %715 = vmatpush.bf16.msra.mxu0 %v706
    %716 = vmatpush.bf16.msra.mxu0 %v705
    %717 = vmatpush.bf16.msra.mxu0 %v704
    %718 = vmatpush.bf16.msra.mxu0 %v703
    %719 = vmatpush.bf16.msra.mxu0 %v702
    %720 = vmatpush.bf16.msra.mxu0 %v701
    %721 = vmatpush.bf16.msra.mxu0 %v700
    %722 = vmatpush.bf16.msra.mxu0 %v699
    %723 = vmatmul.bf16.gmra.mxu0 %v665
    %v724 = vpop.f32.mrf.mxu0
    %v725 = vadd.f32 0.0, %v724
    %v726 = vpop.f32.mrf.mxu0
    %v727 = vadd.f32 0.0, %v726
    %728 = vdwg.mxu0
    %v729 = vadd.f32 %v640, %v725
    %v730 = vadd.f32 %v642, %v727
    %v731 = vadd.f32 %v729, %v730
    %v732 = vrot.slane %v731, 4
    %v733 = vadd.f32 %v731, %v732
    %v734 = vrot.slane %v733, 2
    %v735 = vadd.f32 %v733, %v734
    %v736 = vrot.slane %v735, 1
    %v737 = vadd.f32 %v735, %v736
    %v738 = vmul.f32 %v729, %v729
    %v739 = vmul.f32 %v730, %v730
    %v740 = vadd.f32 %v738, %v739
    %v741 = vrot.slane %v740, 4
    %v742 = vadd.f32 %v740, %v741
    %v743 = vrot.slane %v742, 2
    %v744 = vadd.f32 %v742, %v743
    %v745 = vrot.slane %v744, 1
    %v746 = vadd.f32 %v744, %v745
    %747 = vmatpush.msra.mxu0 %v108
    %748 = vmatpush.msra.mxu0 %v107
    %749 = vmatpush.msra.mxu0 %v106
    %750 = vmatpush.msra.mxu0 %v105
    %751 = vmatpush.msra.mxu0 %v104
    %752 = vmatpush.msra.mxu0 %v103
    %753 = vmatpush.msra.mxu0 %v102
    %754 = vmatpush.msra.mxu0 %v101
    %755 = vmatpush.msra.mxu0 %v100
    %756 = vmatpush.msra.mxu0 %v99
    %757 = vmatpush.msra.mxu0 %v98
    %758 = vmatpush.msra.mxu0 %v97
    %759 = vmatpush.msra.mxu0 %v96
    %760 = vmatpush.msra.mxu0 %v95
    %761 = vmatpush.msra.mxu0 %v94
    %762 = vmatpush.msra.mxu0 %v93
    %763 = vmatmul.f32.gmra.mxu0 %v737
    %v764 = vpop.f32.mrf.mxu0
    %v765 = vadd.f32 0.0, %v764
    %766 = vdwg.mxu0
    %767 = vmatpush.msra.mxu0 %v108
    %768 = vmatpush.msra.mxu0 %v107
    %769 = vmatpush.msra.mxu0 %v106
    %770 = vmatpush.msra.mxu0 %v105
    %771 = vmatpush.msra.mxu0 %v104
    %772 = vmatpush.msra.mxu0 %v103
    %773 = vmatpush.msra.mxu0 %v102
    %774 = vmatpush.msra.mxu0 %v101
    %775 = vmatpush.msra.mxu0 %v100
    %776 = vmatpush.msra.mxu0 %v99
    %777 = vmatpush.msra.mxu0 %v98
    %778 = vmatpush.msra.mxu0 %v97
    %779 = vmatpush.msra.mxu0 %v96
    %780 = vmatpush.msra.mxu0 %v95
    %781 = vmatpush.msra.mxu0 %v94
    %782 = vmatpush.msra.mxu0 %v93
    %783 = vmatmul.f32.gmra.mxu0 %v746
    %v784 = vpop.f32.mrf.mxu0
    %v785 = vadd.f32 0.0, %v784
    %786 = vdwg.mxu0
    %v787 = vmul.f32 %v765, 0.001953125
    %v788 = vmul.f32 %v785, 0.001953125
    %v789 = vmul.f32 %v787, %v787
    %v790 = vsub.f32 %v788, %v789
    %v791 = vld [vmem:[%s6] sm:$0x1]
    %v792 = vadd.f32 %v790, 1e-05
    %v793 = vrsqrt.pop %v792
    %v794 = vmul.f32 %v793, %v792
    %v795 = vmul.f32 %v794, %v793
    %v796 = vmul.f32 0.5, %v795
    %v797 = vsub.f32 1.5, %v796
    %v798 = vmul.f32 %v793, %v797
    %vm799 = vweird.f32 %v792
    %vm800 = vweird.f32 %v793
    %vm801 = vmor %vm799, %vm800
    %v802 = vsel %vm801, %v793, %v798
    %v803 = vmul.f32 %v791, %v802
    %v804 = vld [vmem:[%s7] sm:$0x1]
    %v805 = vmul.f32 %v787, %v803
    %v806 = vsub.f32 %v804, %v805
    %v808 = vperm.slane %v803, 0
    %v810 = vmul.f32 %v729, %v808
    %v811 = vmul.f32 %v730, %v808
    %v813 = vperm.slane %v806, 0
    %v815 = vadd.f32 %v810, %v813
    %v816 = vadd.f32 %v811, %v813
    %v817 = vld [vmem:[#allocation3] sm:$0xff]
    %v818 = vld [vmem:[#allocation3 + $0x8] sm:$0xff]
    %v819 = vadd.f32 %v815, %v817
    %v820 = vadd.f32 %v816, %v818
    %v821 = vmax.f32 %v819, 0.0
    %v822 = vmax.f32 %v820, 0.0
    %823 = vst [vmem:[#allocation11] sm:$0xff] %v821
    %824 = vst [vmem:[#allocation11 + $0x8] sm:$0xff] %v822
    // Predicated region
    $region50: #{tpu_custom_call.1} parent=1 // pred_check
      _
    $region51: #{tpu_custom_call.1} parent=1 // pred_check_branch
      %826 = sbr.rel (0) target = $region53
    $region52: #{tpu_custom_call.1} parent=1 // pred_region
      %828 = vsyncadd [#allocation5], 0
      %s829 = sshll.u32 [#allocation11], 4
      %s830 = int_to_ptr.vmem [resolvable:$true] %s829
      %s831 = sshll.u32 %s8, 4
      %s832 = int_to_ptr.hbm [resolvable:$true] %s831
      %837 = dma.vmem_to_hbm [thread:$0]  %s830, 256, %s832, [#allocation5], 128, 128, 8
    $region53: #{tpu_custom_call.1} parent=1 // pred_fallthru
      _
    // Predicated region
    $region54: #{tpu_custom_call.1} parent=1 // pred_check
      _
    $region55: #{tpu_custom_call.1} parent=1 // pred_check_branch
      %839 = sbr.rel (0) target = $region57
    $region56: #{tpu_custom_call.1} parent=1 // pred_region
      %841 = dma.done [#allocation5], 256
    $region57: #{tpu_custom_call.1} parent=1 // pred_fallthru
      _
    %842 = vsyncpa [#allocation4], 1
    %843 = vsyncpa [#allocation7], 1
    %844 = vsyncpa [#allocation10], 1
    %845 = vsyncpa [#allocation5], 1

</llo_original>
